<compile_context>
chip_gen: v7x
topology: tpu7x:2x2x1
jax: 0.10.0
libtpu: 0.0.40
codegen_flags: <defaults>
</compile_context>

<pallas_src>
import functools
import math

import jax
import jax.numpy as jnp
from jax import lax
from jax.experimental import pallas as pl
from jax.experimental.pallas import tpu as pltpu


def _fourier_kernel(x_ref, freq_ref, amp_ref, phase_ref, o_ref, *,
                    num_harmonics, chunk_rows):
    """out = sum_j A_j * cos(W_j * x + P_j) for one batch tile, row-chunked.

    x_ref     : (TB, Dp) x.dtype  lane-dense packed inputs
    freq_ref  : (K, Dp)  f32      frequencies (transposed + lane-tiled)
    amp_ref   : (K, Dp)  f32      amplitudes
    phase_ref : (K, Dp)  f32      phases
    o_ref     : (TB, Dp) x.dtype
    """
    # Params loaded once per tile (hoisted out of the chunk loop; K*Dp is tiny).
    freq = freq_ref[...]
    amp = amp_ref[...]
    phase = phase_ref[...]

    tile_rows = x_ref.shape[0]
    n_chunks = tile_rows // chunk_rows   # wrapper guarantees exact division

    def do_chunk(r):
        x = x_ref[pl.ds(r, chunk_rows), :].astype(jnp.float32)   # (C, Dp) f32
        acc = jnp.zeros_like(x)
        # num_harmonics is small and static -> unrolled; all (C, Dp) VALU/EUP ops.
        for j in range(num_harmonics):
            acc = acc + amp[j, :] * jnp.cos(freq[j, :] * x + phase[j, :])
        o_ref[pl.ds(r, chunk_rows), :] = acc.astype(o_ref.dtype)

    if n_chunks == 1:
        do_chunk(0)
    else:
        def body(c, carry):
            do_chunk(pl.multiple_of(c * chunk_rows, chunk_rows))
            return carry
        lax.fori_loop(0, n_chunks, body, 0, unroll=(n_chunks <= 8))


def fourier_basis_forward(x, frequencies, amplitudes, phases):
    """x: (B, D); frequencies/amplitudes/phases: (D, K) as in the PyTorch module."""
    B, D = x.shape
    D2, K = frequencies.shape
    assert D == D2, "param output_dim must match x"
    out_dtype = x.dtype
    itemsize = jnp.dtype(out_dtype).itemsize

    LANES = 128

    # Lane-dense repack only when the feature dim is narrower than a vreg row.
    g = (LANES // math.gcd(D, LANES)) if D < LANES else 1
    Dp = g * D

    pad_rows_in = (-B) % g                      # <= g-1 rows, only for the repack reshape
    if pad_rows_in:
        x = jnp.pad(x, ((0, pad_rows_in), (0, 0)))
    rows = (B + pad_rows_in) // g
    x_packed = x.reshape(rows, Dp) if g > 1 else x

    # Params -> (K, Dp) f32: output_dim on the lane axis, tiled to match the packing.
    freq_t = frequencies.T.astype(jnp.float32)
    amp_t = amplitudes.T.astype(jnp.float32)
    phase_t = phases.T.astype(jnp.float32)
    if g > 1:
        freq_t = jnp.tile(freq_t, (1, g))
        amp_t = jnp.tile(amp_t, (1, g))
        phase_t = jnp.tile(phase_t, (1, g))

    # --- generation-aware tile sizing from a VMEM byte budget ---
    try:
        vmem_cap = int(pltpu.get_tpu_info().vmem_capacity_bytes)
    except Exception:
        vmem_cap = 64 * 1024 * 1024             # conservative (v7x per-TC size)
    usable = (vmem_cap * 3) // 4

    row_bytes = Dp * itemsize
    # x & out blocks are each double-buffered (~4x block resident) + params + f32 temps.
    per_block_budget = max(8 * row_bytes, min(4 * 1024 * 1024, usable // 8))

    # Inner chunk: ~8 f32 vregs per live array so the 64-entry vreg file never spills.
    chunk_pref = max(8, ((8192 // max(Dp, 1)) // 8) * 8)

    if rows <= 8:
        tb = rows                                # block dim == full array dim is legal
        chunk = rows
    else:
        tb = min(rows, per_block_budget // row_bytes)
        if rows >= 16:
            # keep grid >= 2 so v7x's two TensorCores both get work
            half = (((rows + 1) // 2) + 7) // 8 * 8
            tb = min(tb, half)
        tb = max(8, (tb // 8) * 8)
        chunk = min(chunk_pref, tb)
        tb = (tb // chunk) * chunk               # chunk evenly divides the tile

    grid = (pl.cdiv(rows, tb),)                  # ragged last block handled by Pallas

    # VMEM limit from actual need, never the whole physical VMEM.
    x_block_bytes = tb * Dp * itemsize
    param_block_bytes = K * Dp * 4
    need = 4 * x_block_bytes + 6 * param_block_bytes + (4 << 20)
    vmem_limit = int(min(max(need, 16 << 20), usable))

    cost = pl.CostEstimate(
        flops=int(4 * rows * Dp * K),
        transcendentals=int(rows * Dp * K),
        bytes_accessed=int(2 * rows * Dp * itemsize + 3 * K * Dp * 4),
    )

    kernel = functools.partial(_fourier_kernel, num_harmonics=K, chunk_rows=chunk)

    out_packed = pl.pallas_call(
        kernel,
        out_shape=jax.ShapeDtypeStruct((rows, Dp), out_dtype),
        grid_spec=pltpu.PrefetchScalarGridSpec(
            num_scalar_prefetch=0,
            grid=grid,
            in_specs=[
                pl.BlockSpec((tb, Dp), lambda i: (i, 0)),   # x tile (lane-dense)
                pl.BlockSpec((K, Dp), lambda i: (0, 0)),    # frequencies (resident)
                pl.BlockSpec((K, Dp), lambda i: (0, 0)),    # amplitudes  (resident)
                pl.BlockSpec((K, Dp), lambda i: (0, 0)),    # phases      (resident)
            ],
            out_specs=pl.BlockSpec((tb, Dp), lambda i: (i, 0)),
        ),
        compiler_params=pltpu.CompilerParams(
            dimension_semantics=("parallel",),
            vmem_limit_bytes=vmem_limit,
        ),
        cost_estimate=cost,
    )(x_packed, freq_t, amp_t, phase_t)

    if g > 1:
        out = out_packed.reshape(rows * g, D)
        if pad_rows_in:
            out = out[:B]
    else:
        out = out_packed
    return out


def fourier_basis_reference(x, frequencies, amplitudes, phases):
    """Pure-JAX reference mirroring the PyTorch forward exactly."""
    term = amplitudes[None] * jnp.cos(
        frequencies[None] * x[:, :, None].astype(jnp.float32) + phases[None]
    )                                                        # (B, D, K)
    return term.sum(axis=-1).astype(x.dtype)                 # (B, D)


if __name__ == "__main__":
    # Small, deterministic setup consistent with the module:
    #   x: (batch, output_dim), params: (output_dim, num_harmonics)
    batch = 16
    output_dim = 32
    num_harmonics = 8

    key = jax.random.PRNGKey(0)
    kx, kf = jax.random.split(key, 2)

    x = jax.random.normal(kx, (batch, output_dim), dtype=jnp.float32)
    # Matches the PyTorch learnable init:
    #   frequencies = randn(D, K) * 0.1 + (arange(1, K+1) * pi)
    #   amplitudes  = 0.5 * ones(D, K)
    #   phases      = zeros(D, K)
    base_freq = (jnp.arange(1, num_harmonics + 1, dtype=jnp.float32) * jnp.pi)[None, :]
    frequencies = (
        jax.random.normal(kf, (output_dim, num_harmonics), jnp.float32) * 0.1
        + jnp.broadcast_to(base_freq, (output_dim, num_harmonics))
    )
    amplitudes = jnp.ones((output_dim, num_harmonics), jnp.float32) * 0.5
    phases = jnp.zeros((output_dim, num_harmonics), jnp.float32)

    out = fourier_basis_forward(x, frequencies, amplitudes, phases)
    out = jax.block_until_ready(out)

    ref = fourier_basis_reference(x, frequencies, amplitudes, phases)
    assert out.shape == (batch, output_dim)
    assert out.dtype == x.dtype
    assert jnp.allclose(out, ref, atol=1e-4, rtol=1e-4), "mismatch vs reference"

    print("KERNEL_OK")
</pallas_src>

<mosaic_0001>
module attributes {stable_mosaic.version = 11 : i64} {
  func.func @_fourier_kernel(%arg0: i32, %arg1: memref<4x128xf32, #tpu.memory_space<vmem>>, %arg2: memref<8x128xf32, #tpu.memory_space<vmem>>, %arg3: memref<8x128xf32, #tpu.memory_space<vmem>>, %arg4: memref<8x128xf32, #tpu.memory_space<vmem>>, %arg5: memref<4x128xf32, #tpu.memory_space<vmem>>) attributes {dimension_semantics = [#tpu.dimension_semantics<parallel>], iteration_bounds = array<i64: 1>, scalar_prefetch = 0 : i64, scratch_operands = 0 : i64, tpu.core_type = #tpu.core_type<tc>, window_params = [{transform_indices = @transform_0, window_bounds = array<i64: 4, 128>}, {pipeline_mode = #tpu.pipeline_mode<synchronous>, transform_indices = @transform_1, window_bounds = array<i64: 8, 128>}, {pipeline_mode = #tpu.pipeline_mode<synchronous>, transform_indices = @transform_2, window_bounds = array<i64: 8, 128>}, {pipeline_mode = #tpu.pipeline_mode<synchronous>, transform_indices = @transform_3, window_bounds = array<i64: 8, 128>}, {transform_indices = @transform_4, window_bounds = array<i64: 4, 128>}]} {
    %c0 = arith.constant 0 : index
    %c0_0 = arith.constant 0 : index
    %0 = vector.load %arg2[%c0, %c0_0] : memref<8x128xf32, #tpu.memory_space<vmem>>, vector<8x128xf32>
    %c0_1 = arith.constant 0 : index
    %c0_2 = arith.constant 0 : index
    %1 = vector.load %arg3[%c0_1, %c0_2] : memref<8x128xf32, #tpu.memory_space<vmem>>, vector<8x128xf32>
    %c0_3 = arith.constant 0 : index
    %c0_4 = arith.constant 0 : index
    %2 = vector.load %arg4[%c0_3, %c0_4] : memref<8x128xf32, #tpu.memory_space<vmem>>, vector<8x128xf32>
    %c0_5 = arith.constant 0 : index
    %c0_6 = arith.constant 0 : index
    %3 = vector.load %arg1[%c0_5, %c0_6] : memref<4x128xf32, #tpu.memory_space<vmem>>, vector<4x128xf32>
    %cst = arith.constant 0.000000e+00 : f32
    %4 = vector.broadcast %cst : f32 to vector<4x128xf32>
    %5 = vector.extract_strided_slice %1 {offsets = [0, 0], sizes = [1, 128], strides = [1, 1]} : vector<8x128xf32> to vector<1x128xf32>
    %6 = vector.shape_cast %5 : vector<1x128xf32> to vector<128xf32>
    %7 = vector.extract_strided_slice %0 {offsets = [0, 0], sizes = [1, 128], strides = [1, 1]} : vector<8x128xf32> to vector<1x128xf32>
    %8 = vector.shape_cast %7 : vector<1x128xf32> to vector<128xf32>
    %9 = vector.shape_cast %8 : vector<128xf32> to vector<1x128xf32>
    %10 = vector.broadcast %9 : vector<1x128xf32> to vector<4x128xf32>
    %11 = arith.mulf %10, %3 : vector<4x128xf32>
    %12 = vector.extract_strided_slice %2 {offsets = [0, 0], sizes = [1, 128], strides = [1, 1]} : vector<8x128xf32> to vector<1x128xf32>
    %13 = vector.shape_cast %12 : vector<1x128xf32> to vector<128xf32>
    %14 = vector.shape_cast %13 : vector<128xf32> to vector<1x128xf32>
    %15 = vector.broadcast %14 : vector<1x128xf32> to vector<4x128xf32>
    %16 = arith.addf %11, %15 : vector<4x128xf32>
    %17 = math.cos %16 : vector<4x128xf32>
    %18 = vector.shape_cast %6 : vector<128xf32> to vector<1x128xf32>
    %19 = vector.broadcast %18 : vector<1x128xf32> to vector<4x128xf32>
    %20 = arith.mulf %19, %17 : vector<4x128xf32>
    %21 = arith.addf %4, %20 : vector<4x128xf32>
    %22 = vector.extract_strided_slice %1 {offsets = [1, 0], sizes = [1, 128], strides = [1, 1]} : vector<8x128xf32> to vector<1x128xf32>
    %23 = vector.shape_cast %22 : vector<1x128xf32> to vector<128xf32>
    %24 = vector.extract_strided_slice %0 {offsets = [1, 0], sizes = [1, 128], strides = [1, 1]} : vector<8x128xf32> to vector<1x128xf32>
    %25 = vector.shape_cast %24 : vector<1x128xf32> to vector<128xf32>
    %26 = vector.shape_cast %25 : vector<128xf32> to vector<1x128xf32>
    %27 = vector.broadcast %26 : vector<1x128xf32> to vector<4x128xf32>
    %28 = arith.mulf %27, %3 : vector<4x128xf32>
    %29 = vector.extract_strided_slice %2 {offsets = [1, 0], sizes = [1, 128], strides = [1, 1]} : vector<8x128xf32> to vector<1x128xf32>
    %30 = vector.shape_cast %29 : vector<1x128xf32> to vector<128xf32>
    %31 = vector.shape_cast %30 : vector<128xf32> to vector<1x128xf32>
    %32 = vector.broadcast %31 : vector<1x128xf32> to vector<4x128xf32>
    %33 = arith.addf %28, %32 : vector<4x128xf32>
    %34 = math.cos %33 : vector<4x128xf32>
    %35 = vector.shape_cast %23 : vector<128xf32> to vector<1x128xf32>
    %36 = vector.broadcast %35 : vector<1x128xf32> to vector<4x128xf32>
    %37 = arith.mulf %36, %34 : vector<4x128xf32>
    %38 = arith.addf %21, %37 : vector<4x128xf32>
    %39 = vector.extract_strided_slice %1 {offsets = [2, 0], sizes = [1, 128], strides = [1, 1]} : vector<8x128xf32> to vector<1x128xf32>
    %40 = vector.shape_cast %39 : vector<1x128xf32> to vector<128xf32>
    %41 = vector.extract_strided_slice %0 {offsets = [2, 0], sizes = [1, 128], strides = [1, 1]} : vector<8x128xf32> to vector<1x128xf32>
    %42 = vector.shape_cast %41 : vector<1x128xf32> to vector<128xf32>
    %43 = vector.shape_cast %42 : vector<128xf32> to vector<1x128xf32>
    %44 = vector.broadcast %43 : vector<1x128xf32> to vector<4x128xf32>
    %45 = arith.mulf %44, %3 : vector<4x128xf32>
    %46 = vector.extract_strided_slice %2 {offsets = [2, 0], sizes = [1, 128], strides = [1, 1]} : vector<8x128xf32> to vector<1x128xf32>
    %47 = vector.shape_cast %46 : vector<1x128xf32> to vector<128xf32>
    %48 = vector.shape_cast %47 : vector<128xf32> to vector<1x128xf32>
    %49 = vector.broadcast %48 : vector<1x128xf32> to vector<4x128xf32>
    %50 = arith.addf %45, %49 : vector<4x128xf32>
    %51 = math.cos %50 : vector<4x128xf32>
    %52 = vector.shape_cast %40 : vector<128xf32> to vector<1x128xf32>
    %53 = vector.broadcast %52 : vector<1x128xf32> to vector<4x128xf32>
    %54 = arith.mulf %53, %51 : vector<4x128xf32>
    %55 = arith.addf %38, %54 : vector<4x128xf32>
    %56 = vector.extract_strided_slice %1 {offsets = [3, 0], sizes = [1, 128], strides = [1, 1]} : vector<8x128xf32> to vector<1x128xf32>
    %57 = vector.shape_cast %56 : vector<1x128xf32> to vector<128xf32>
    %58 = vector.extract_strided_slice %0 {offsets = [3, 0], sizes = [1, 128], strides = [1, 1]} : vector<8x128xf32> to vector<1x128xf32>
    %59 = vector.shape_cast %58 : vector<1x128xf32> to vector<128xf32>
    %60 = vector.shape_cast %59 : vector<128xf32> to vector<1x128xf32>
    %61 = vector.broadcast %60 : vector<1x128xf32> to vector<4x128xf32>
    %62 = arith.mulf %61, %3 : vector<4x128xf32>
    %63 = vector.extract_strided_slice %2 {offsets = [3, 0], sizes = [1, 128], strides = [1, 1]} : vector<8x128xf32> to vector<1x128xf32>
    %64 = vector.shape_cast %63 : vector<1x128xf32> to vector<128xf32>
    %65 = vector.shape_cast %64 : vector<128xf32> to vector<1x128xf32>
    %66 = vector.broadcast %65 : vector<1x128xf32> to vector<4x128xf32>
    %67 = arith.addf %62, %66 : vector<4x128xf32>
    %68 = math.cos %67 : vector<4x128xf32>
    %69 = vector.shape_cast %57 : vector<128xf32> to vector<1x128xf32>
    %70 = vector.broadcast %69 : vector<1x128xf32> to vector<4x128xf32>
    %71 = arith.mulf %70, %68 : vector<4x128xf32>
    %72 = arith.addf %55, %71 : vector<4x128xf32>
    %73 = vector.extract_strided_slice %1 {offsets = [4, 0], sizes = [1, 128], strides = [1, 1]} : vector<8x128xf32> to vector<1x128xf32>
    %74 = vector.shape_cast %73 : vector<1x128xf32> to vector<128xf32>
    %75 = vector.extract_strided_slice %0 {offsets = [4, 0], sizes = [1, 128], strides = [1, 1]} : vector<8x128xf32> to vector<1x128xf32>
    %76 = vector.shape_cast %75 : vector<1x128xf32> to vector<128xf32>
    %77 = vector.shape_cast %76 : vector<128xf32> to vector<1x128xf32>
    %78 = vector.broadcast %77 : vector<1x128xf32> to vector<4x128xf32>
    %79 = arith.mulf %78, %3 : vector<4x128xf32>
    %80 = vector.extract_strided_slice %2 {offsets = [4, 0], sizes = [1, 128], strides = [1, 1]} : vector<8x128xf32> to vector<1x128xf32>
    %81 = vector.shape_cast %80 : vector<1x128xf32> to vector<128xf32>
    %82 = vector.shape_cast %81 : vector<128xf32> to vector<1x128xf32>
    %83 = vector.broadcast %82 : vector<1x128xf32> to vector<4x128xf32>
    %84 = arith.addf %79, %83 : vector<4x128xf32>
    %85 = math.cos %84 : vector<4x128xf32>
    %86 = vector.shape_cast %74 : vector<128xf32> to vector<1x128xf32>
    %87 = vector.broadcast %86 : vector<1x128xf32> to vector<4x128xf32>
    %88 = arith.mulf %87, %85 : vector<4x128xf32>
    %89 = arith.addf %72, %88 : vector<4x128xf32>
    %90 = vector.extract_strided_slice %1 {offsets = [5, 0], sizes = [1, 128], strides = [1, 1]} : vector<8x128xf32> to vector<1x128xf32>
    %91 = vector.shape_cast %90 : vector<1x128xf32> to vector<128xf32>
    %92 = vector.extract_strided_slice %0 {offsets = [5, 0], sizes = [1, 128], strides = [1, 1]} : vector<8x128xf32> to vector<1x128xf32>
    %93 = vector.shape_cast %92 : vector<1x128xf32> to vector<128xf32>
    %94 = vector.shape_cast %93 : vector<128xf32> to vector<1x128xf32>
    %95 = vector.broadcast %94 : vector<1x128xf32> to vector<4x128xf32>
    %96 = arith.mulf %95, %3 : vector<4x128xf32>
    %97 = vector.extract_strided_slice %2 {offsets = [5, 0], sizes = [1, 128], strides = [1, 1]} : vector<8x128xf32> to vector<1x128xf32>
    %98 = vector.shape_cast %97 : vector<1x128xf32> to vector<128xf32>
    %99 = vector.shape_cast %98 : vector<128xf32> to vector<1x128xf32>
    %100 = vector.broadcast %99 : vector<1x128xf32> to vector<4x128xf32>
    %101 = arith.addf %96, %100 : vector<4x128xf32>
    %102 = math.cos %101 : vector<4x128xf32>
    %103 = vector.shape_cast %91 : vector<128xf32> to vector<1x128xf32>
    %104 = vector.broadcast %103 : vector<1x128xf32> to vector<4x128xf32>
    %105 = arith.mulf %104, %102 : vector<4x128xf32>
    %106 = arith.addf %89, %105 : vector<4x128xf32>
    %107 = vector.extract_strided_slice %1 {offsets = [6, 0], sizes = [1, 128], strides = [1, 1]} : vector<8x128xf32> to vector<1x128xf32>
    %108 = vector.shape_cast %107 : vector<1x128xf32> to vector<128xf32>
    %109 = vector.extract_strided_slice %0 {offsets = [6, 0], sizes = [1, 128], strides = [1, 1]} : vector<8x128xf32> to vector<1x128xf32>
    %110 = vector.shape_cast %109 : vector<1x128xf32> to vector<128xf32>
    %111 = vector.shape_cast %110 : vector<128xf32> to vector<1x128xf32>
    %112 = vector.broadcast %111 : vector<1x128xf32> to vector<4x128xf32>
    %113 = arith.mulf %112, %3 : vector<4x128xf32>
    %114 = vector.extract_strided_slice %2 {offsets = [6, 0], sizes = [1, 128], strides = [1, 1]} : vector<8x128xf32> to vector<1x128xf32>
    %115 = vector.shape_cast %114 : vector<1x128xf32> to vector<128xf32>
    %116 = vector.shape_cast %115 : vector<128xf32> to vector<1x128xf32>
    %117 = vector.broadcast %116 : vector<1x128xf32> to vector<4x128xf32>
    %118 = arith.addf %113, %117 : vector<4x128xf32>
    %119 = math.cos %118 : vector<4x128xf32>
    %120 = vector.shape_cast %108 : vector<128xf32> to vector<1x128xf32>
    %121 = vector.broadcast %120 : vector<1x128xf32> to vector<4x128xf32>
    %122 = arith.mulf %121, %119 : vector<4x128xf32>
    %123 = arith.addf %106, %122 : vector<4x128xf32>
    %124 = vector.extract_strided_slice %1 {offsets = [7, 0], sizes = [1, 128], strides = [1, 1]} : vector<8x128xf32> to vector<1x128xf32>
    %125 = vector.shape_cast %124 : vector<1x128xf32> to vector<128xf32>
    %126 = vector.extract_strided_slice %0 {offsets = [7, 0], sizes = [1, 128], strides = [1, 1]} : vector<8x128xf32> to vector<1x128xf32>
    %127 = vector.shape_cast %126 : vector<1x128xf32> to vector<128xf32>
    %128 = vector.shape_cast %127 : vector<128xf32> to vector<1x128xf32>
    %129 = vector.broadcast %128 : vector<1x128xf32> to vector<4x128xf32>
    %130 = arith.mulf %129, %3 : vector<4x128xf32>
    %131 = vector.extract_strided_slice %2 {offsets = [7, 0], sizes = [1, 128], strides = [1, 1]} : vector<8x128xf32> to vector<1x128xf32>
    %132 = vector.shape_cast %131 : vector<1x128xf32> to vector<128xf32>
    %133 = vector.shape_cast %132 : vector<128xf32> to vector<1x128xf32>
    %134 = vector.broadcast %133 : vector<1x128xf32> to vector<4x128xf32>
    %135 = arith.addf %130, %134 : vector<4x128xf32>
    %136 = math.cos %135 : vector<4x128xf32>
    %137 = vector.shape_cast %125 : vector<128xf32> to vector<1x128xf32>
    %138 = vector.broadcast %137 : vector<1x128xf32> to vector<4x128xf32>
    %139 = arith.mulf %138, %136 : vector<4x128xf32>
    %140 = arith.addf %123, %139 : vector<4x128xf32>
    %c0_7 = arith.constant 0 : index
    %c0_8 = arith.constant 0 : index
    %141 = vector.load %arg5[%c0_7, %c0_8] : memref<4x128xf32, #tpu.memory_space<vmem>>, vector<4x128xf32>
    tpu.vector_store %arg5[%c0_7, %c0_8], %140 {strides = array<i32>} : memref<4x128xf32, #tpu.memory_space<vmem>>, vector<4x128xf32>,
    return
  }
  func.func @transform_0(%arg0: i32) -> (i32, i32) {
    %c0_i32 = arith.constant 0 : i32
    %c0_i32_0 = arith.constant 0 : i32
    return %arg0, %c0_i32 : i32, i32
  }
  func.func @transform_1(%arg0: i32) -> (i32, i32) {
    %c0_i32 = arith.constant 0 : i32
    %c0_i32_0 = arith.constant 0 : i32
    %c0_i32_1 = arith.constant 0 : i32
    return %c0_i32, %c0_i32_0 : i32, i32
  }
  func.func @transform_2(%arg0: i32) -> (i32, i32) {
    %c0_i32 = arith.constant 0 : i32
    %c0_i32_0 = arith.constant 0 : i32
    %c0_i32_1 = arith.constant 0 : i32
    return %c0_i32, %c0_i32_0 : i32, i32
  }
  func.func @transform_3(%arg0: i32) -> (i32, i32) {
    %c0_i32 = arith.constant 0 : i32
    %c0_i32_0 = arith.constant 0 : i32
    %c0_i32_1 = arith.constant 0 : i32
    return %c0_i32, %c0_i32_0 : i32, i32
  }
  func.func @transform_4(%arg0: i32) -> (i32, i32) {
    %c0_i32 = arith.constant 0 : i32
    %c0_i32_0 = arith.constant 0 : i32
    return %arg0, %c0_i32 : i32, i32
  }
}

</mosaic_0001>

<llo_original>
// kernel: tpu_custom_call.1
$region0: #{tpu_custom_call.1}
  #allocation0 [shape = 'u32[]', space=smem, size = 0x4, offset = 0x4, fixed_abs, tag = 'smem constant byte address 0x4 - core index']
  #allocation1 [shape = 'u32[144,128]{1,0:T(1,128)}', space=vmem, size = 0x12000, scoped, tag = 'internal scratch']
  %s0 = inlined_call_operand.hbm [shape: f32[4,128], index: 0, kind: input, shape index: {}]
  %s1 = inlined_call_operand.hbm [shape: f32[8,128], index: 1, kind: input, shape index: {}]
  %s2 = inlined_call_operand.hbm [shape: f32[8,128], index: 2, kind: input, shape index: {}]
  %s3 = inlined_call_operand.vmem [shape: f32[8,128], index: 3, kind: input, shape index: {}]
  %s4 = inlined_call_operand.hbm [shape: f32[4,128], index: 4, kind: output, shape index: {}]
  %s5 = sld [smem:[#allocation0]]
  $region38: #{tpu_custom_call.1} parent=0
    _
  %s7 = ssub.s32 1, %s5
  %s8 = scalar_select 0, %s7, %s5
  $region1: #{tpu_custom_call.1} parent=0
    #allocation2 [shape = 'u8[2048]{0}', space=vmem, size = 0x800, scoped, tag = 'input window, operand 0, single buffered']
    #allocation3 [shape = 's32[1]{0}', space=sflag, size = 0x4, scoped, tag = 'scoped memory for tpu_custom_call.1']
    #allocation4 [shape = 's32[1]{0}', space=sflag, size = 0x4, scoped, tag = 'scoped memory for tpu_custom_call.1']
    #allocation5 [shape = 'u8[4096]{0}', space=vmem, size = 0x1000, scoped, tag = 'input window, operand 1, single buffered']
    #allocation6 [shape = 's32[1]{0}', space=sflag, size = 0x4, scoped, tag = 'scoped memory for tpu_custom_call.1']
    #allocation7 [shape = 'u8[4096]{0}', space=vmem, size = 0x1000, scoped, tag = 'input window, operand 2, single buffered']
    #allocation8 [shape = 'u8[2048]{0}', space=vmem, size = 0x800, scoped, tag = 'output window, operand 0, single buffered']
    %9 = vsyncpa [#allocation3], 0
    %10 = vsyncpa [#allocation6], 0
    %11 = vsyncpa [#allocation4], 0
    // Predicated region
    $region2: #{tpu_custom_call.1} parent=1 // pred_check
      _
    $region3: #{tpu_custom_call.1} parent=1 // pred_check_branch
      %13 = sbr.rel (0) target = $region5
    $region4: #{tpu_custom_call.1} parent=1 // pred_region
      %s15 = ssub.s32 64, 64
      %16 = vsyncadd [#allocation3], %s15
      %s18 = sshll.u32 [#allocation2], 4
      %s19 = int_to_ptr.vmem [resolvable:$true] %s18
      %21 = dma.hbm_to_vmem [thread:$0]  %s0, 64, %s19, [#allocation3]
    $region5: #{tpu_custom_call.1} parent=1 // pred_fallthru
      _
    // Predicated region
    $region6: #{tpu_custom_call.1} parent=1 // pred_check
      _
    $region7: #{tpu_custom_call.1} parent=1 // pred_check_branch
      %23 = sbr.rel (0) target = $region9
    $region8: #{tpu_custom_call.1} parent=1 // pred_region
      %s25 = ssub.s32 128, 128
      %26 = vsyncadd [#allocation6], %s25
      %s28 = sshll.u32 [#allocation5], 4
      %s29 = int_to_ptr.vmem [resolvable:$true] %s28
      %31 = dma.hbm_to_vmem [thread:$0]  %s1, 128, %s29, [#allocation6]
    $region9: #{tpu_custom_call.1} parent=1 // pred_fallthru
      _
    // Predicated region
    $region10: #{tpu_custom_call.1} parent=1 // pred_check
      _
    $region11: #{tpu_custom_call.1} parent=1 // pred_check_branch
      %33 = sbr.rel (0) target = $region13
    $region12: #{tpu_custom_call.1} parent=1 // pred_region
      %s35 = ssub.s32 128, 128
      %36 = vsyncadd [#allocation6], %s35
      %s38 = sshll.u32 [#allocation7], 4
      %s39 = int_to_ptr.vmem [resolvable:$true] %s38
      %41 = dma.hbm_to_vmem [thread:$0]  %s2, 128, %s39, [#allocation6]
    $region13: #{tpu_custom_call.1} parent=1 // pred_fallthru
      _
    // Predicated region
    $region14: #{tpu_custom_call.1} parent=1 // pred_check
      _
    $region15: #{tpu_custom_call.1} parent=1 // pred_check_branch
      %43 = sbr.rel (0) target = $region17
    $region16: #{tpu_custom_call.1} parent=1 // pred_region
      _
    $region17: #{tpu_custom_call.1} parent=1 // pred_fallthru
      _
    // Predicated region
    $region18: #{tpu_custom_call.1} parent=1 // pred_check
      _
    $region19: #{tpu_custom_call.1} parent=1 // pred_check_branch
      %45 = sbr.rel (0) target = $region21
    $region20: #{tpu_custom_call.1} parent=1 // pred_region
      %46 = dma.done [#allocation3], 64
    $region21: #{tpu_custom_call.1} parent=1 // pred_fallthru
      _
    // Predicated region
    $region22: #{tpu_custom_call.1} parent=1 // pred_check
      _
    $region23: #{tpu_custom_call.1} parent=1 // pred_check_branch
      %48 = sbr.rel (0) target = $region25
    $region24: #{tpu_custom_call.1} parent=1 // pred_region
      %49 = dma.done [#allocation6], 128
    $region25: #{tpu_custom_call.1} parent=1 // pred_fallthru
      _
    // Predicated region
    $region26: #{tpu_custom_call.1} parent=1 // pred_check
      _
    $region27: #{tpu_custom_call.1} parent=1 // pred_check_branch
      %51 = sbr.rel (0) target = $region29
    $region28: #{tpu_custom_call.1} parent=1 // pred_region
      %52 = dma.done [#allocation6], 128
    $region29: #{tpu_custom_call.1} parent=1 // pred_fallthru
      _
    %v53 = vld [vmem:[#allocation5] sm:$0xff]
    %v54 = vld [vmem:[#allocation7] sm:$0xff]
    %v55 = vld [vmem:[%s3] sm:$0xff]
    %v56 = vld [vmem:[#allocation2] sm:$0xf]
    %v57 = vlaneseq
    %v58 = vshrl.u32 %v57, 7
    %v59 = vsub.s32 0, %v58
    %v60 = vrot.slane %v53, %v59
    %v61 = vmul.f32 %v60, %v56
    %v62 = vlaneseq
    %v63 = vshrl.u32 %v62, 7
    %v64 = vsub.s32 0, %v63
    %v65 = vrot.slane %v55, %v64
    %v66 = vadd.f32 %v61, %v65
    %v67 = vand.u32 2147483647, %v66
    %vm68 = vcmp.le.f32.partialorder %v67, 0.7853982
    %vm69 = vcmp.lt.s32.totalorder %v66, 0
    %v70 = vand.u32 %v66, 2139095040
    %v71 = vshrl.u32 %v70, 23
    %v72 = vsub.s32 %v71, 127
    %v73 = vand.u32 2147483647, %v66
    %v74 = vand.u32 %v73, 8388607
    %v75 = vor.u32 %v74, 8388608
    %v76 = vsub.s32 0, %v75
    %v77 = vadd.s32 %v72, 1
    %vm78 = vcmp.gt.s32.totalorder %v77, 0
    %v79 = vsel %vm78, %v77, 0
    %v80 = vshrl.u32 %v79, 5
    %v81 = vand.u32 %v79, 31
    %v82 = vsub.s32 32, %v81
    %v83 = vshrl.u32 683565275, %v82
    %v84 = vshll.u32 683565275, %v81
    %v85 = vshrl.u32 2475754826, %v82
    %v86 = vor.u32 %v84, %v85
    %v87 = vshll.u32 2475754826, %v81
    %v88 = vshrl.u32 2131351028, %v82
    %v89 = vor.u32 %v87, %v88
    %v90 = vshll.u32 2131351028, %v81
    %v91 = vshrl.u32 2102212464, %v82
    %v92 = vor.u32 %v90, %v91
    %v93 = vshll.u32 2102212464, %v81
    %v94 = vshrl.u32 920167782, %v82
    %v95 = vor.u32 %v93, %v94
    %v96 = vshll.u32 920167782, %v81
    %v97 = vshrl.u32 1326507024, %v82
    %v98 = vor.u32 %v96, %v97
    %vm99 = vcmp.lt.s32.totalorder %v80, 1
    %vm100 = vcmp.lt.s32.totalorder %v80, 2
    %vm101 = vcmp.lt.s32.totalorder %v80, 3
    %vm102 = vcmp.lt.s32.totalorder %v80, 4
    %v103 = vsel %vm99, %v83, %v86
    %v104 = vsel %vm102, %v92, 2102212464
    %v105 = vsel %vm101, %v89, %v104
    %v106 = vsel %vm100, %v103, %v105
    %v107 = vsel %vm99, %v86, %v89
    %v108 = vsel %vm102, %v95, 920167782
    %v109 = vsel %vm101, %v92, %v108
    %v110 = vsel %vm100, %v107, %v109
    %v111 = vsel %vm99, %v89, %v92
    %v112 = vsel %vm102, %v98, 1326507024
    %v113 = vsel %vm101, %v95, %v112
    %v114 = vsel %vm100, %v111, %v113
    %v115 = vshll.u32 %v75, 8
    %v116 = vmul.u32.u64.compose %v115, %v114
    %v117 = vextract.low.u32 %v116
    %v118 = vextract.high.u32 %v116
    %v119 = vmul.u32.u64.compose %v115, %v110
    %v120 = vextract.low.u32 %v119
    %v121 = vextract.high.u32 %v119
    %v122 = vmul.u32 %v115, %v106
    %v123 = vadd.s32 %v118, %v120
    %vm124 = vc.u32 %v118, %v120
    %v125 = vadd.s32 %v121, 1
    %v126 = vsel %vm124, %v125, %v121
    %v127 = vadd.s32 %v122, %v126
    %v128 = vadd.s32 %v127, 536870912
    %v129 = vshrl.u32 %v128, 30
    %v130 = vshll.u32 %v129, 30
    %v131 = vsub.s32 %v127, %v130
    %vm132 = vcmp.lt.s32.totalorder %v131, 0
    %v133 = vsub.s32 0, %v131
    %v134 = vsel %vm132, %v133, %v131
    %v135 = vclz %v134
    %v136 = vsub.s32 %v135, 2
    %vm137 = vcmp.gt.s32.totalorder 0, %v136
    %v138 = vsel %vm137, 0, %v136
    %v139 = vsub.s32 32, %v138
    %v140 = vshll.u32 %v131, %v138
    %v141 = vshrl.u32 %v123, %v139
    %v142 = vor.u32 %v140, %v141
    %v143 = vsub.s32 4294967266, %v138
    %v144 = vadd.s32 %v143, 127
    %v145 = vshll.u32 %v144, 23
    %v146 = vor.u32 4788187, %v145
    %v147 = vand.u32 2147483647, %v146
    %v149 = vcvt.s32.f32 %v142
    %v150 = vmul.f32 %v149, %v147
    %v151 = vxor.u32 %v150, 2147483648
    %v152 = vsel %vm69, %v151, %v150
    %v153 = vsub.s32 4, %v129
    %v154 = vsel %vm69, %v153, %v129
    %v155 = vsel %vm68, %v66, %v152
    %v156 = vsel %vm68, 0, %v154
    %v157 = vcosq.f32.pop %v155
    %v158 = vsinq.f32.pop %v155
    %vm159 = vweird.f32 %v66
    %v160 = vand.u32 %v156, 3
    %vm161 = vcmp.lt.s32.totalorder %v160, 2
    %vm162 = vcmp.eq.s32.totalorder %v160, 0
    %v163 = vxor.u32 %v158, 2147483648
    %v164 = vsel %vm162, %v157, %v163
    %vm165 = vcmp.eq.s32.totalorder %v160, 2
    %v166 = vxor.u32 %v157, 2147483648
    %v167 = vsel %vm165, %v166, %v158
    %v168 = vsel %vm161, %v164, %v167
    %v169 = vsel %vm159, nan, %v168
    %v170 = vlaneseq
    %v171 = vshrl.u32 %v170, 7
    %v172 = vsub.s32 0, %v171
    %v173 = vrot.slane %v54, %v172
    %v174 = vmul.f32 %v173, %v169
    %v175 = vadd.f32 %v174, 0.0
    %v176 = vlaneseq
    %v177 = vshrl.u32 %v176, 7
    %v178 = vsub.s32 1, %v177
    %v179 = vrot.slane %v53, %v178
    %v180 = vmul.f32 %v179, %v56
    %v181 = vlaneseq
    %v182 = vshrl.u32 %v181, 7
    %v183 = vsub.s32 1, %v182
    %v184 = vrot.slane %v55, %v183
    %v185 = vadd.f32 %v180, %v184
    %v186 = vand.u32 2147483647, %v185
    %vm187 = vcmp.le.f32.partialorder %v186, 0.7853982
    %vm188 = vcmp.lt.s32.totalorder %v185, 0
    %v189 = vand.u32 %v185, 2139095040
    %v190 = vshrl.u32 %v189, 23
    %v191 = vsub.s32 %v190, 127
    %v192 = vand.u32 2147483647, %v185
    %v193 = vand.u32 %v192, 8388607
    %v194 = vor.u32 %v193, 8388608
    %v195 = vsub.s32 0, %v194
    %v196 = vadd.s32 %v191, 1
    %vm197 = vcmp.gt.s32.totalorder %v196, 0
    %v198 = vsel %vm197, %v196, 0
    %v199 = vshrl.u32 %v198, 5
    %v200 = vand.u32 %v198, 31
    %v201 = vsub.s32 32, %v200
    %v202 = vshrl.u32 683565275, %v201
    %v203 = vshll.u32 683565275, %v200
    %v204 = vshrl.u32 2475754826, %v201
    %v205 = vor.u32 %v203, %v204
    %v206 = vshll.u32 2475754826, %v200
    %v207 = vshrl.u32 2131351028, %v201
    %v208 = vor.u32 %v206, %v207
    %v209 = vshll.u32 2131351028, %v200
    %v210 = vshrl.u32 2102212464, %v201
    %v211 = vor.u32 %v209, %v210
    %v212 = vshll.u32 2102212464, %v200
    %v213 = vshrl.u32 920167782, %v201
    %v214 = vor.u32 %v212, %v213
    %v215 = vshll.u32 920167782, %v200
    %v216 = vshrl.u32 1326507024, %v201
    %v217 = vor.u32 %v215, %v216
    %vm218 = vcmp.lt.s32.totalorder %v199, 1
    %vm219 = vcmp.lt.s32.totalorder %v199, 2
    %vm220 = vcmp.lt.s32.totalorder %v199, 3
    %vm221 = vcmp.lt.s32.totalorder %v199, 4
    %v222 = vsel %vm218, %v202, %v205
    %v223 = vsel %vm221, %v211, 2102212464
    %v224 = vsel %vm220, %v208, %v223
    %v225 = vsel %vm219, %v222, %v224
    %v226 = vsel %vm218, %v205, %v208
    %v227 = vsel %vm221, %v214, 920167782
    %v228 = vsel %vm220, %v211, %v227
    %v229 = vsel %vm219, %v226, %v228
    %v230 = vsel %vm218, %v208, %v211
    %v231 = vsel %vm221, %v217, 1326507024
    %v232 = vsel %vm220, %v214, %v231
    %v233 = vsel %vm219, %v230, %v232
    %v234 = vshll.u32 %v194, 8
    %v235 = vmul.u32.u64.compose %v234, %v233
    %v236 = vextract.low.u32 %v235
    %v237 = vextract.high.u32 %v235
    %v238 = vmul.u32.u64.compose %v234, %v229
    %v239 = vextract.low.u32 %v238
    %v240 = vextract.high.u32 %v238
    %v241 = vmul.u32 %v234, %v225
    %v242 = vadd.s32 %v237, %v239
    %vm243 = vc.u32 %v237, %v239
    %v244 = vadd.s32 %v240, 1
    %v245 = vsel %vm243, %v244, %v240
    %v246 = vadd.s32 %v241, %v245
    %v247 = vadd.s32 %v246, 536870912
    %v248 = vshrl.u32 %v247, 30
    %v249 = vshll.u32 %v248, 30
    %v250 = vsub.s32 %v246, %v249
    %vm251 = vcmp.lt.s32.totalorder %v250, 0
    %v252 = vsub.s32 0, %v250
    %v253 = vsel %vm251, %v252, %v250
    %v254 = vclz %v253
    %v255 = vsub.s32 %v254, 2
    %vm256 = vcmp.gt.s32.totalorder 0, %v255
    %v257 = vsel %vm256, 0, %v255
    %v258 = vsub.s32 32, %v257
    %v259 = vshll.u32 %v250, %v257
    %v260 = vshrl.u32 %v242, %v258
    %v261 = vor.u32 %v259, %v260
    %v262 = vsub.s32 4294967266, %v257
    %v263 = vadd.s32 %v262, 127
    %v264 = vshll.u32 %v263, 23
    %v265 = vor.u32 4788187, %v264
    %v266 = vand.u32 2147483647, %v265
    %v268 = vcvt.s32.f32 %v261
    %v269 = vmul.f32 %v268, %v266
    %v270 = vxor.u32 %v269, 2147483648
    %v271 = vsel %vm188, %v270, %v269
    %v272 = vsub.s32 4, %v248
    %v273 = vsel %vm188, %v272, %v248
    %v274 = vsel %vm187, %v185, %v271
    %v275 = vsel %vm187, 0, %v273
    %v276 = vcosq.f32.pop %v274
    %v277 = vsinq.f32.pop %v274
    %vm278 = vweird.f32 %v185
    %v279 = vand.u32 %v275, 3
    %vm280 = vcmp.lt.s32.totalorder %v279, 2
    %vm281 = vcmp.eq.s32.totalorder %v279, 0
    %v282 = vxor.u32 %v277, 2147483648
    %v283 = vsel %vm281, %v276, %v282
    %vm284 = vcmp.eq.s32.totalorder %v279, 2
    %v285 = vxor.u32 %v276, 2147483648
    %v286 = vsel %vm284, %v285, %v277
    %v287 = vsel %vm280, %v283, %v286
    %v288 = vsel %vm278, nan, %v287
    %v289 = vlaneseq
    %v290 = vshrl.u32 %v289, 7
    %v291 = vsub.s32 1, %v290
    %v292 = vrot.slane %v54, %v291
    %v293 = vmul.f32 %v292, %v288
    %v294 = vadd.f32 %v175, %v293
    %v295 = vlaneseq
    %v296 = vshrl.u32 %v295, 7
    %v297 = vsub.s32 2, %v296
    %v298 = vrot.slane %v53, %v297
    %v299 = vmul.f32 %v298, %v56
    %v300 = vlaneseq
    %v301 = vshrl.u32 %v300, 7
    %v302 = vsub.s32 2, %v301
    %v303 = vrot.slane %v55, %v302
    %v304 = vadd.f32 %v299, %v303
    %v305 = vand.u32 2147483647, %v304
    %vm306 = vcmp.le.f32.partialorder %v305, 0.7853982
    %vm307 = vcmp.lt.s32.totalorder %v304, 0
    %v308 = vand.u32 %v304, 2139095040
    %v309 = vshrl.u32 %v308, 23
    %v310 = vsub.s32 %v309, 127
    %v311 = vand.u32 2147483647, %v304
    %v312 = vand.u32 %v311, 8388607
    %v313 = vor.u32 %v312, 8388608
    %v314 = vsub.s32 0, %v313
    %v315 = vadd.s32 %v310, 1
    %vm316 = vcmp.gt.s32.totalorder %v315, 0
    %v317 = vsel %vm316, %v315, 0
    %v318 = vshrl.u32 %v317, 5
    %v319 = vand.u32 %v317, 31
    %v320 = vsub.s32 32, %v319
    %v321 = vshrl.u32 683565275, %v320
    %v322 = vshll.u32 683565275, %v319
    %v323 = vshrl.u32 2475754826, %v320
    %v324 = vor.u32 %v322, %v323
    %v325 = vshll.u32 2475754826, %v319
    %v326 = vshrl.u32 2131351028, %v320
    %v327 = vor.u32 %v325, %v326
    %v328 = vshll.u32 2131351028, %v319
    %v329 = vshrl.u32 2102212464, %v320
    %v330 = vor.u32 %v328, %v329
    %v331 = vshll.u32 2102212464, %v319
    %v332 = vshrl.u32 920167782, %v320
    %v333 = vor.u32 %v331, %v332
    %v334 = vshll.u32 920167782, %v319
    %v335 = vshrl.u32 1326507024, %v320
    %v336 = vor.u32 %v334, %v335
    %vm337 = vcmp.lt.s32.totalorder %v318, 1
    %vm338 = vcmp.lt.s32.totalorder %v318, 2
    %vm339 = vcmp.lt.s32.totalorder %v318, 3
    %vm340 = vcmp.lt.s32.totalorder %v318, 4
    %v341 = vsel %vm337, %v321, %v324
    %v342 = vsel %vm340, %v330, 2102212464
    %v343 = vsel %vm339, %v327, %v342
    %v344 = vsel %vm338, %v341, %v343
    %v345 = vsel %vm337, %v324, %v327
    %v346 = vsel %vm340, %v333, 920167782
    %v347 = vsel %vm339, %v330, %v346
    %v348 = vsel %vm338, %v345, %v347
    %v349 = vsel %vm337, %v327, %v330
    %v350 = vsel %vm340, %v336, 1326507024
    %v351 = vsel %vm339, %v333, %v350
    %v352 = vsel %vm338, %v349, %v351
    %v353 = vshll.u32 %v313, 8
    %v354 = vmul.u32.u64.compose %v353, %v352
    %v355 = vextract.low.u32 %v354
    %v356 = vextract.high.u32 %v354
    %v357 = vmul.u32.u64.compose %v353, %v348
    %v358 = vextract.low.u32 %v357
    %v359 = vextract.high.u32 %v357
    %v360 = vmul.u32 %v353, %v344
    %v361 = vadd.s32 %v356, %v358
    %vm362 = vc.u32 %v356, %v358
    %v363 = vadd.s32 %v359, 1
    %v364 = vsel %vm362, %v363, %v359
    %v365 = vadd.s32 %v360, %v364
    %v366 = vadd.s32 %v365, 536870912
    %v367 = vshrl.u32 %v366, 30
    %v368 = vshll.u32 %v367, 30
    %v369 = vsub.s32 %v365, %v368
    %vm370 = vcmp.lt.s32.totalorder %v369, 0
    %v371 = vsub.s32 0, %v369
    %v372 = vsel %vm370, %v371, %v369
    %v373 = vclz %v372
    %v374 = vsub.s32 %v373, 2
    %vm375 = vcmp.gt.s32.totalorder 0, %v374
    %v376 = vsel %vm375, 0, %v374
    %v377 = vsub.s32 32, %v376
    %v378 = vshll.u32 %v369, %v376
    %v379 = vshrl.u32 %v361, %v377
    %v380 = vor.u32 %v378, %v379
    %v381 = vsub.s32 4294967266, %v376
    %v382 = vadd.s32 %v381, 127
    %v383 = vshll.u32 %v382, 23
    %v384 = vor.u32 4788187, %v383
    %v385 = vand.u32 2147483647, %v384
    %v387 = vcvt.s32.f32 %v380
    %v388 = vmul.f32 %v387, %v385
    %v389 = vxor.u32 %v388, 2147483648
    %v390 = vsel %vm307, %v389, %v388
    %v391 = vsub.s32 4, %v367
    %v392 = vsel %vm307, %v391, %v367
    %v393 = vsel %vm306, %v304, %v390
    %v394 = vsel %vm306, 0, %v392
    %v395 = vcosq.f32.pop %v393
    %v396 = vsinq.f32.pop %v393
    %vm397 = vweird.f32 %v304
    %v398 = vand.u32 %v394, 3
    %vm399 = vcmp.lt.s32.totalorder %v398, 2
    %vm400 = vcmp.eq.s32.totalorder %v398, 0
    %v401 = vxor.u32 %v396, 2147483648
    %v402 = vsel %vm400, %v395, %v401
    %vm403 = vcmp.eq.s32.totalorder %v398, 2
    %v404 = vxor.u32 %v395, 2147483648
    %v405 = vsel %vm403, %v404, %v396
    %v406 = vsel %vm399, %v402, %v405
    %v407 = vsel %vm397, nan, %v406
    %v408 = vlaneseq
    %v409 = vshrl.u32 %v408, 7
    %v410 = vsub.s32 2, %v409
    %v411 = vrot.slane %v54, %v410
    %v412 = vmul.f32 %v411, %v407
    %v413 = vadd.f32 %v294, %v412
    %v414 = vlaneseq
    %v415 = vshrl.u32 %v414, 7
    %v416 = vsub.s32 3, %v415
    %v417 = vrot.slane %v53, %v416
    %v418 = vmul.f32 %v417, %v56
    %v419 = vlaneseq
    %v420 = vshrl.u32 %v419, 7
    %v421 = vsub.s32 3, %v420
    %v422 = vrot.slane %v55, %v421
    %v423 = vadd.f32 %v418, %v422
    %v424 = vand.u32 2147483647, %v423
    %vm425 = vcmp.le.f32.partialorder %v424, 0.7853982
    %vm426 = vcmp.lt.s32.totalorder %v423, 0
    %v427 = vand.u32 %v423, 2139095040
    %v428 = vshrl.u32 %v427, 23
    %v429 = vsub.s32 %v428, 127
    %v430 = vand.u32 2147483647, %v423
    %v431 = vand.u32 %v430, 8388607
    %v432 = vor.u32 %v431, 8388608
    %v433 = vsub.s32 0, %v432
    %v434 = vadd.s32 %v429, 1
    %vm435 = vcmp.gt.s32.totalorder %v434, 0
    %v436 = vsel %vm435, %v434, 0
    %v437 = vshrl.u32 %v436, 5
    %v438 = vand.u32 %v436, 31
    %v439 = vsub.s32 32, %v438
    %v440 = vshrl.u32 683565275, %v439
    %v441 = vshll.u32 683565275, %v438
    %v442 = vshrl.u32 2475754826, %v439
    %v443 = vor.u32 %v441, %v442
    %v444 = vshll.u32 2475754826, %v438
    %v445 = vshrl.u32 2131351028, %v439
    %v446 = vor.u32 %v444, %v445
    %v447 = vshll.u32 2131351028, %v438
    %v448 = vshrl.u32 2102212464, %v439
    %v449 = vor.u32 %v447, %v448
    %v450 = vshll.u32 2102212464, %v438
    %v451 = vshrl.u32 920167782, %v439
    %v452 = vor.u32 %v450, %v451
    %v453 = vshll.u32 920167782, %v438
    %v454 = vshrl.u32 1326507024, %v439
    %v455 = vor.u32 %v453, %v454
    %vm456 = vcmp.lt.s32.totalorder %v437, 1
    %vm457 = vcmp.lt.s32.totalorder %v437, 2
    %vm458 = vcmp.lt.s32.totalorder %v437, 3
    %vm459 = vcmp.lt.s32.totalorder %v437, 4
    %v460 = vsel %vm456, %v440, %v443
    %v461 = vsel %vm459, %v449, 2102212464
    %v462 = vsel %vm458, %v446, %v461
    %v463 = vsel %vm457, %v460, %v462
    %v464 = vsel %vm456, %v443, %v446
    %v465 = vsel %vm459, %v452, 920167782
    %v466 = vsel %vm458, %v449, %v465
    %v467 = vsel %vm457, %v464, %v466
    %v468 = vsel %vm456, %v446, %v449
    %v469 = vsel %vm459, %v455, 1326507024
    %v470 = vsel %vm458, %v452, %v469
    %v471 = vsel %vm457, %v468, %v470
    %v472 = vshll.u32 %v432, 8
    %v473 = vmul.u32.u64.compose %v472, %v471
    %v474 = vextract.low.u32 %v473
    %v475 = vextract.high.u32 %v473
    %v476 = vmul.u32.u64.compose %v472, %v467
    %v477 = vextract.low.u32 %v476
    %v478 = vextract.high.u32 %v476
    %v479 = vmul.u32 %v472, %v463
    %v480 = vadd.s32 %v475, %v477
    %vm481 = vc.u32 %v475, %v477
    %v482 = vadd.s32 %v478, 1
    %v483 = vsel %vm481, %v482, %v478
    %v484 = vadd.s32 %v479, %v483
    %v485 = vadd.s32 %v484, 536870912
    %v486 = vshrl.u32 %v485, 30
    %v487 = vshll.u32 %v486, 30
    %v488 = vsub.s32 %v484, %v487
    %vm489 = vcmp.lt.s32.totalorder %v488, 0
    %v490 = vsub.s32 0, %v488
    %v491 = vsel %vm489, %v490, %v488
    %v492 = vclz %v491
    %v493 = vsub.s32 %v492, 2
    %vm494 = vcmp.gt.s32.totalorder 0, %v493
    %v495 = vsel %vm494, 0, %v493
    %v496 = vsub.s32 32, %v495
    %v497 = vshll.u32 %v488, %v495
    %v498 = vshrl.u32 %v480, %v496
    %v499 = vor.u32 %v497, %v498
    %v500 = vsub.s32 4294967266, %v495
    %v501 = vadd.s32 %v500, 127
    %v502 = vshll.u32 %v501, 23
    %v503 = vor.u32 4788187, %v502
    %v504 = vand.u32 2147483647, %v503
    %v506 = vcvt.s32.f32 %v499
    %v507 = vmul.f32 %v506, %v504
    %v508 = vxor.u32 %v507, 2147483648
    %v509 = vsel %vm426, %v508, %v507
    %v510 = vsub.s32 4, %v486
    %v511 = vsel %vm426, %v510, %v486
    %v512 = vsel %vm425, %v423, %v509
    %v513 = vsel %vm425, 0, %v511
    %v514 = vcosq.f32.pop %v512
    %v515 = vsinq.f32.pop %v512
    %vm516 = vweird.f32 %v423
    %v517 = vand.u32 %v513, 3
    %vm518 = vcmp.lt.s32.totalorder %v517, 2
    %vm519 = vcmp.eq.s32.totalorder %v517, 0
    %v520 = vxor.u32 %v515, 2147483648
    %v521 = vsel %vm519, %v514, %v520
    %vm522 = vcmp.eq.s32.totalorder %v517, 2
    %v523 = vxor.u32 %v514, 2147483648
    %v524 = vsel %vm522, %v523, %v515
    %v525 = vsel %vm518, %v521, %v524
    %v526 = vsel %vm516, nan, %v525
    %v527 = vlaneseq
    %v528 = vshrl.u32 %v527, 7
    %v529 = vsub.s32 3, %v528
    %v530 = vrot.slane %v54, %v529
    %v531 = vmul.f32 %v530, %v526
    %v532 = vadd.f32 %v413, %v531
    %v533 = vlaneseq
    %v534 = vshrl.u32 %v533, 7
    %v535 = vsub.s32 4, %v534
    %v536 = vrot.slane %v53, %v535
    %v537 = vmul.f32 %v536, %v56
    %v538 = vlaneseq
    %v539 = vshrl.u32 %v538, 7
    %v540 = vsub.s32 4, %v539
    %v541 = vrot.slane %v55, %v540
    %v542 = vadd.f32 %v537, %v541
    %v543 = vand.u32 2147483647, %v542
    %vm544 = vcmp.le.f32.partialorder %v543, 0.7853982
    %vm545 = vcmp.lt.s32.totalorder %v542, 0
    %v546 = vand.u32 %v542, 2139095040
    %v547 = vshrl.u32 %v546, 23
    %v548 = vsub.s32 %v547, 127
    %v549 = vand.u32 2147483647, %v542
    %v550 = vand.u32 %v549, 8388607
    %v551 = vor.u32 %v550, 8388608
    %v552 = vsub.s32 0, %v551
    %v553 = vadd.s32 %v548, 1
    %vm554 = vcmp.gt.s32.totalorder %v553, 0
    %v555 = vsel %vm554, %v553, 0
    %v556 = vshrl.u32 %v555, 5
    %v557 = vand.u32 %v555, 31
    %v558 = vsub.s32 32, %v557
    %v559 = vshrl.u32 683565275, %v558
    %v560 = vshll.u32 683565275, %v557
    %v561 = vshrl.u32 2475754826, %v558
    %v562 = vor.u32 %v560, %v561
    %v563 = vshll.u32 2475754826, %v557
    %v564 = vshrl.u32 2131351028, %v558
    %v565 = vor.u32 %v563, %v564
    %v566 = vshll.u32 2131351028, %v557
    %v567 = vshrl.u32 2102212464, %v558
    %v568 = vor.u32 %v566, %v567
    %v569 = vshll.u32 2102212464, %v557
    %v570 = vshrl.u32 920167782, %v558
    %v571 = vor.u32 %v569, %v570
    %v572 = vshll.u32 920167782, %v557
    %v573 = vshrl.u32 1326507024, %v558
    %v574 = vor.u32 %v572, %v573
    %vm575 = vcmp.lt.s32.totalorder %v556, 1
    %vm576 = vcmp.lt.s32.totalorder %v556, 2
    %vm577 = vcmp.lt.s32.totalorder %v556, 3
    %vm578 = vcmp.lt.s32.totalorder %v556, 4
    %v579 = vsel %vm575, %v559, %v562
    %v580 = vsel %vm578, %v568, 2102212464
    %v581 = vsel %vm577, %v565, %v580
    %v582 = vsel %vm576, %v579, %v581
    %v583 = vsel %vm575, %v562, %v565
    %v584 = vsel %vm578, %v571, 920167782
    %v585 = vsel %vm577, %v568, %v584
    %v586 = vsel %vm576, %v583, %v585
    %v587 = vsel %vm575, %v565, %v568
    %v588 = vsel %vm578, %v574, 1326507024
    %v589 = vsel %vm577, %v571, %v588
    %v590 = vsel %vm576, %v587, %v589
    %v591 = vshll.u32 %v551, 8
    %v592 = vmul.u32.u64.compose %v591, %v590
    %v593 = vextract.low.u32 %v592
    %v594 = vextract.high.u32 %v592
    %v595 = vmul.u32.u64.compose %v591, %v586
    %v596 = vextract.low.u32 %v595
    %v597 = vextract.high.u32 %v595
    %v598 = vmul.u32 %v591, %v582
    %v599 = vadd.s32 %v594, %v596
    %vm600 = vc.u32 %v594, %v596
    %v601 = vadd.s32 %v597, 1
    %v602 = vsel %vm600, %v601, %v597
    %v603 = vadd.s32 %v598, %v602
    %v604 = vadd.s32 %v603, 536870912
    %v605 = vshrl.u32 %v604, 30
    %v606 = vshll.u32 %v605, 30
    %v607 = vsub.s32 %v603, %v606
    %vm608 = vcmp.lt.s32.totalorder %v607, 0
    %v609 = vsub.s32 0, %v607
    %v610 = vsel %vm608, %v609, %v607
    %v611 = vclz %v610
    %v612 = vsub.s32 %v611, 2
    %vm613 = vcmp.gt.s32.totalorder 0, %v612
    %v614 = vsel %vm613, 0, %v612
    %v615 = vsub.s32 32, %v614
    %v616 = vshll.u32 %v607, %v614
    %v617 = vshrl.u32 %v599, %v615
    %v618 = vor.u32 %v616, %v617
    %v619 = vsub.s32 4294967266, %v614
    %v620 = vadd.s32 %v619, 127
    %v621 = vshll.u32 %v620, 23
    %v622 = vor.u32 4788187, %v621
    %v623 = vand.u32 2147483647, %v622
    %v625 = vcvt.s32.f32 %v618
    %v626 = vmul.f32 %v625, %v623
    %v627 = vxor.u32 %v626, 2147483648
    %v628 = vsel %vm545, %v627, %v626
    %v629 = vsub.s32 4, %v605
    %v630 = vsel %vm545, %v629, %v605
    %v631 = vsel %vm544, %v542, %v628
    %v632 = vsel %vm544, 0, %v630
    %v633 = vcosq.f32.pop %v631
    %v634 = vsinq.f32.pop %v631
    %vm635 = vweird.f32 %v542
    %v636 = vand.u32 %v632, 3
    %vm637 = vcmp.lt.s32.totalorder %v636, 2
    %vm638 = vcmp.eq.s32.totalorder %v636, 0
    %v639 = vxor.u32 %v634, 2147483648
    %v640 = vsel %vm638, %v633, %v639
    %vm641 = vcmp.eq.s32.totalorder %v636, 2
    %v642 = vxor.u32 %v633, 2147483648
    %v643 = vsel %vm641, %v642, %v634
    %v644 = vsel %vm637, %v640, %v643
    %v645 = vsel %vm635, nan, %v644
    %v646 = vlaneseq
    %v647 = vshrl.u32 %v646, 7
    %v648 = vsub.s32 4, %v647
    %v649 = vrot.slane %v54, %v648
    %v650 = vmul.f32 %v649, %v645
    %v651 = vadd.f32 %v532, %v650
    %v652 = vlaneseq
    %v653 = vshrl.u32 %v652, 7
    %v654 = vsub.s32 5, %v653
    %v655 = vrot.slane %v53, %v654
    %v656 = vmul.f32 %v655, %v56
    %v657 = vlaneseq
    %v658 = vshrl.u32 %v657, 7
    %v659 = vsub.s32 5, %v658
    %v660 = vrot.slane %v55, %v659
    %v661 = vadd.f32 %v656, %v660
    %v662 = vand.u32 2147483647, %v661
    %vm663 = vcmp.le.f32.partialorder %v662, 0.7853982
    %vm664 = vcmp.lt.s32.totalorder %v661, 0
    %v665 = vand.u32 %v661, 2139095040
    %v666 = vshrl.u32 %v665, 23
    %v667 = vsub.s32 %v666, 127
    %v668 = vand.u32 2147483647, %v661
    %v669 = vand.u32 %v668, 8388607
    %v670 = vor.u32 %v669, 8388608
    %v671 = vsub.s32 0, %v670
    %v672 = vadd.s32 %v667, 1
    %vm673 = vcmp.gt.s32.totalorder %v672, 0
    %v674 = vsel %vm673, %v672, 0
    %v675 = vshrl.u32 %v674, 5
    %v676 = vand.u32 %v674, 31
    %v677 = vsub.s32 32, %v676
    %v678 = vshrl.u32 683565275, %v677
    %v679 = vshll.u32 683565275, %v676
    %v680 = vshrl.u32 2475754826, %v677
    %v681 = vor.u32 %v679, %v680
    %v682 = vshll.u32 2475754826, %v676
    %v683 = vshrl.u32 2131351028, %v677
    %v684 = vor.u32 %v682, %v683
    %v685 = vshll.u32 2131351028, %v676
    %v686 = vshrl.u32 2102212464, %v677
    %v687 = vor.u32 %v685, %v686
    %v688 = vshll.u32 2102212464, %v676
    %v689 = vshrl.u32 920167782, %v677
    %v690 = vor.u32 %v688, %v689
    %v691 = vshll.u32 920167782, %v676
    %v692 = vshrl.u32 1326507024, %v677
    %v693 = vor.u32 %v691, %v692
    %vm694 = vcmp.lt.s32.totalorder %v675, 1
    %vm695 = vcmp.lt.s32.totalorder %v675, 2
    %vm696 = vcmp.lt.s32.totalorder %v675, 3
    %vm697 = vcmp.lt.s32.totalorder %v675, 4
    %v698 = vsel %vm694, %v678, %v681
    %v699 = vsel %vm697, %v687, 2102212464
    %v700 = vsel %vm696, %v684, %v699
    %v701 = vsel %vm695, %v698, %v700
    %v702 = vsel %vm694, %v681, %v684
    %v703 = vsel %vm697, %v690, 920167782
    %v704 = vsel %vm696, %v687, %v703
    %v705 = vsel %vm695, %v702, %v704
    %v706 = vsel %vm694, %v684, %v687
    %v707 = vsel %vm697, %v693, 1326507024
    %v708 = vsel %vm696, %v690, %v707
    %v709 = vsel %vm695, %v706, %v708
    %v710 = vshll.u32 %v670, 8
    %v711 = vmul.u32.u64.compose %v710, %v709
    %v712 = vextract.low.u32 %v711
    %v713 = vextract.high.u32 %v711
    %v714 = vmul.u32.u64.compose %v710, %v705
    %v715 = vextract.low.u32 %v714
    %v716 = vextract.high.u32 %v714
    %v717 = vmul.u32 %v710, %v701
    %v718 = vadd.s32 %v713, %v715
    %vm719 = vc.u32 %v713, %v715
    %v720 = vadd.s32 %v716, 1
    %v721 = vsel %vm719, %v720, %v716
    %v722 = vadd.s32 %v717, %v721
    %v723 = vadd.s32 %v722, 536870912
    %v724 = vshrl.u32 %v723, 30
    %v725 = vshll.u32 %v724, 30
    %v726 = vsub.s32 %v722, %v725
    %vm727 = vcmp.lt.s32.totalorder %v726, 0
    %v728 = vsub.s32 0, %v726
    %v729 = vsel %vm727, %v728, %v726
    %v730 = vclz %v729
    %v731 = vsub.s32 %v730, 2
    %vm732 = vcmp.gt.s32.totalorder 0, %v731
    %v733 = vsel %vm732, 0, %v731
    %v734 = vsub.s32 32, %v733
    %v735 = vshll.u32 %v726, %v733
    %v736 = vshrl.u32 %v718, %v734
    %v737 = vor.u32 %v735, %v736
    %v738 = vsub.s32 4294967266, %v733
    %v739 = vadd.s32 %v738, 127
    %v740 = vshll.u32 %v739, 23
    %v741 = vor.u32 4788187, %v740
    %v742 = vand.u32 2147483647, %v741
    %v744 = vcvt.s32.f32 %v737
    %v745 = vmul.f32 %v744, %v742
    %v746 = vxor.u32 %v745, 2147483648
    %v747 = vsel %vm664, %v746, %v745
    %v748 = vsub.s32 4, %v724
    %v749 = vsel %vm664, %v748, %v724
    %v750 = vsel %vm663, %v661, %v747
    %v751 = vsel %vm663, 0, %v749
    %v752 = vcosq.f32.pop %v750
    %v753 = vsinq.f32.pop %v750
    %vm754 = vweird.f32 %v661
    %v755 = vand.u32 %v751, 3
    %vm756 = vcmp.lt.s32.totalorder %v755, 2
    %vm757 = vcmp.eq.s32.totalorder %v755, 0
    %v758 = vxor.u32 %v753, 2147483648
    %v759 = vsel %vm757, %v752, %v758
    %vm760 = vcmp.eq.s32.totalorder %v755, 2
    %v761 = vxor.u32 %v752, 2147483648
    %v762 = vsel %vm760, %v761, %v753
    %v763 = vsel %vm756, %v759, %v762
    %v764 = vsel %vm754, nan, %v763
    %v765 = vlaneseq
    %v766 = vshrl.u32 %v765, 7
    %v767 = vsub.s32 5, %v766
    %v768 = vrot.slane %v54, %v767
    %v769 = vmul.f32 %v768, %v764
    %v770 = vadd.f32 %v651, %v769
    %v771 = vlaneseq
    %v772 = vshrl.u32 %v771, 7
    %v773 = vsub.s32 6, %v772
    %v774 = vrot.slane %v53, %v773
    %v775 = vmul.f32 %v774, %v56
    %v776 = vlaneseq
    %v777 = vshrl.u32 %v776, 7
    %v778 = vsub.s32 6, %v777
    %v779 = vrot.slane %v55, %v778
    %v780 = vadd.f32 %v775, %v779
    %v781 = vand.u32 2147483647, %v780
    %vm782 = vcmp.le.f32.partialorder %v781, 0.7853982
    %vm783 = vcmp.lt.s32.totalorder %v780, 0
    %v784 = vand.u32 %v780, 2139095040
    %v785 = vshrl.u32 %v784, 23
    %v786 = vsub.s32 %v785, 127
    %v787 = vand.u32 2147483647, %v780
    %v788 = vand.u32 %v787, 8388607
    %v789 = vor.u32 %v788, 8388608
    %v790 = vsub.s32 0, %v789
    %v791 = vadd.s32 %v786, 1
    %vm792 = vcmp.gt.s32.totalorder %v791, 0
    %v793 = vsel %vm792, %v791, 0
    %v794 = vshrl.u32 %v793, 5
    %v795 = vand.u32 %v793, 31
    %v796 = vsub.s32 32, %v795
    %v797 = vshrl.u32 683565275, %v796
    %v798 = vshll.u32 683565275, %v795
    %v799 = vshrl.u32 2475754826, %v796
    %v800 = vor.u32 %v798, %v799
    %v801 = vshll.u32 2475754826, %v795
    %v802 = vshrl.u32 2131351028, %v796
    %v803 = vor.u32 %v801, %v802
    %v804 = vshll.u32 2131351028, %v795
    %v805 = vshrl.u32 2102212464, %v796
    %v806 = vor.u32 %v804, %v805
    %v807 = vshll.u32 2102212464, %v795
    %v808 = vshrl.u32 920167782, %v796
    %v809 = vor.u32 %v807, %v808
    %v810 = vshll.u32 920167782, %v795
    %v811 = vshrl.u32 1326507024, %v796
    %v812 = vor.u32 %v810, %v811
    %vm813 = vcmp.lt.s32.totalorder %v794, 1
    %vm814 = vcmp.lt.s32.totalorder %v794, 2
    %vm815 = vcmp.lt.s32.totalorder %v794, 3
    %vm816 = vcmp.lt.s32.totalorder %v794, 4
    %v817 = vsel %vm813, %v797, %v800
    %v818 = vsel %vm816, %v806, 2102212464
    %v819 = vsel %vm815, %v803, %v818
    %v820 = vsel %vm814, %v817, %v819
    %v821 = vsel %vm813, %v800, %v803
    %v822 = vsel %vm816, %v809, 920167782
    %v823 = vsel %vm815, %v806, %v822
    %v824 = vsel %vm814, %v821, %v823
    %v825 = vsel %vm813, %v803, %v806
    %v826 = vsel %vm816, %v812, 1326507024
    %v827 = vsel %vm815, %v809, %v826
    %v828 = vsel %vm814, %v825, %v827
    %v829 = vshll.u32 %v789, 8
    %v830 = vmul.u32.u64.compose %v829, %v828
    %v831 = vextract.low.u32 %v830
    %v832 = vextract.high.u32 %v830
    %v833 = vmul.u32.u64.compose %v829, %v824
    %v834 = vextract.low.u32 %v833
    %v835 = vextract.high.u32 %v833
    %v836 = vmul.u32 %v829, %v820
    %v837 = vadd.s32 %v832, %v834
    %vm838 = vc.u32 %v832, %v834
    %v839 = vadd.s32 %v835, 1
    %v840 = vsel %vm838, %v839, %v835
    %v841 = vadd.s32 %v836, %v840
    %v842 = vadd.s32 %v841, 536870912
    %v843 = vshrl.u32 %v842, 30
    %v844 = vshll.u32 %v843, 30
    %v845 = vsub.s32 %v841, %v844
    %vm846 = vcmp.lt.s32.totalorder %v845, 0
    %v847 = vsub.s32 0, %v845
    %v848 = vsel %vm846, %v847, %v845
    %v849 = vclz %v848
    %v850 = vsub.s32 %v849, 2
    %vm851 = vcmp.gt.s32.totalorder 0, %v850
    %v852 = vsel %vm851, 0, %v850
    %v853 = vsub.s32 32, %v852
    %v854 = vshll.u32 %v845, %v852
    %v855 = vshrl.u32 %v837, %v853
    %v856 = vor.u32 %v854, %v855
    %v857 = vsub.s32 4294967266, %v852
    %v858 = vadd.s32 %v857, 127
    %v859 = vshll.u32 %v858, 23
    %v860 = vor.u32 4788187, %v859
    %v861 = vand.u32 2147483647, %v860
    %v863 = vcvt.s32.f32 %v856
    %v864 = vmul.f32 %v863, %v861
    %v865 = vxor.u32 %v864, 2147483648
    %v866 = vsel %vm783, %v865, %v864
    %v867 = vsub.s32 4, %v843
    %v868 = vsel %vm783, %v867, %v843
    %v869 = vsel %vm782, %v780, %v866
    %v870 = vsel %vm782, 0, %v868
    %v871 = vcosq.f32.pop %v869
    %v872 = vsinq.f32.pop %v869
    %vm873 = vweird.f32 %v780
    %v874 = vand.u32 %v870, 3
    %vm875 = vcmp.lt.s32.totalorder %v874, 2
    %vm876 = vcmp.eq.s32.totalorder %v874, 0
    %v877 = vxor.u32 %v872, 2147483648
    %v878 = vsel %vm876, %v871, %v877
    %vm879 = vcmp.eq.s32.totalorder %v874, 2
    %v880 = vxor.u32 %v871, 2147483648
    %v881 = vsel %vm879, %v880, %v872
    %v882 = vsel %vm875, %v878, %v881
    %v883 = vsel %vm873, nan, %v882
    %v884 = vlaneseq
    %v885 = vshrl.u32 %v884, 7
    %v886 = vsub.s32 6, %v885
    %v887 = vrot.slane %v54, %v886
    %v888 = vmul.f32 %v887, %v883
    %v889 = vadd.f32 %v770, %v888
    %v890 = vlaneseq
    %v891 = vshrl.u32 %v890, 7
    %v892 = vsub.s32 7, %v891
    %v893 = vrot.slane %v53, %v892
    %v894 = vmul.f32 %v893, %v56
    %v895 = vlaneseq
    %v896 = vshrl.u32 %v895, 7
    %v897 = vsub.s32 7, %v896
    %v898 = vrot.slane %v55, %v897
    %v899 = vadd.f32 %v894, %v898
    %v900 = vand.u32 2147483647, %v899
    %vm901 = vcmp.le.f32.partialorder %v900, 0.7853982
    %vm902 = vcmp.lt.s32.totalorder %v899, 0
    %v903 = vand.u32 %v899, 2139095040
    %v904 = vshrl.u32 %v903, 23
    %v905 = vsub.s32 %v904, 127
    %v906 = vand.u32 2147483647, %v899
    %v907 = vand.u32 %v906, 8388607
    %v908 = vor.u32 %v907, 8388608
    %v909 = vsub.s32 0, %v908
    %v910 = vadd.s32 %v905, 1
    %vm911 = vcmp.gt.s32.totalorder %v910, 0
    %v912 = vsel %vm911, %v910, 0
    %v913 = vshrl.u32 %v912, 5
    %v914 = vand.u32 %v912, 31
    %v915 = vsub.s32 32, %v914
    %v916 = vshrl.u32 683565275, %v915
    %v917 = vshll.u32 683565275, %v914
    %v918 = vshrl.u32 2475754826, %v915
    %v919 = vor.u32 %v917, %v918
    %v920 = vshll.u32 2475754826, %v914
    %v921 = vshrl.u32 2131351028, %v915
    %v922 = vor.u32 %v920, %v921
    %v923 = vshll.u32 2131351028, %v914
    %v924 = vshrl.u32 2102212464, %v915
    %v925 = vor.u32 %v923, %v924
    %v926 = vshll.u32 2102212464, %v914
    %v927 = vshrl.u32 920167782, %v915
    %v928 = vor.u32 %v926, %v927
    %v929 = vshll.u32 920167782, %v914
    %v930 = vshrl.u32 1326507024, %v915
    %v931 = vor.u32 %v929, %v930
    %vm932 = vcmp.lt.s32.totalorder %v913, 1
    %vm933 = vcmp.lt.s32.totalorder %v913, 2
    %vm934 = vcmp.lt.s32.totalorder %v913, 3
    %vm935 = vcmp.lt.s32.totalorder %v913, 4
    %v936 = vsel %vm932, %v916, %v919
    %v937 = vsel %vm935, %v925, 2102212464
    %v938 = vsel %vm934, %v922, %v937
    %v939 = vsel %vm933, %v936, %v938
    %v940 = vsel %vm932, %v919, %v922
    %v941 = vsel %vm935, %v928, 920167782
    %v942 = vsel %vm934, %v925, %v941
    %v943 = vsel %vm933, %v940, %v942
    %v944 = vsel %vm932, %v922, %v925
    %v945 = vsel %vm935, %v931, 1326507024
    %v946 = vsel %vm934, %v928, %v945
    %v947 = vsel %vm933, %v944, %v946
    %v948 = vshll.u32 %v908, 8
    %v949 = vmul.u32.u64.compose %v948, %v947
    %v950 = vextract.low.u32 %v949
    %v951 = vextract.high.u32 %v949
    %v952 = vmul.u32.u64.compose %v948, %v943
    %v953 = vextract.low.u32 %v952
    %v954 = vextract.high.u32 %v952
    %v955 = vmul.u32 %v948, %v939
    %v956 = vadd.s32 %v951, %v953
    %vm957 = vc.u32 %v951, %v953
    %v958 = vadd.s32 %v954, 1
    %v959 = vsel %vm957, %v958, %v954
    %v960 = vadd.s32 %v955, %v959
    %v961 = vadd.s32 %v960, 536870912
    %v962 = vshrl.u32 %v961, 30
    %v963 = vshll.u32 %v962, 30
    %v964 = vsub.s32 %v960, %v963
    %vm965 = vcmp.lt.s32.totalorder %v964, 0
    %v966 = vsub.s32 0, %v964
    %v967 = vsel %vm965, %v966, %v964
    %v968 = vclz %v967
    %v969 = vsub.s32 %v968, 2
    %vm970 = vcmp.gt.s32.totalorder 0, %v969
    %v971 = vsel %vm970, 0, %v969
    %v972 = vsub.s32 32, %v971
    %v973 = vshll.u32 %v964, %v971
    %v974 = vshrl.u32 %v956, %v972
    %v975 = vor.u32 %v973, %v974
    %v976 = vsub.s32 4294967266, %v971
    %v977 = vadd.s32 %v976, 127
    %v978 = vshll.u32 %v977, 23
    %v979 = vor.u32 4788187, %v978
    %v980 = vand.u32 2147483647, %v979
    %v982 = vcvt.s32.f32 %v975
    %v983 = vmul.f32 %v982, %v980
    %v984 = vxor.u32 %v983, 2147483648
    %v985 = vsel %vm902, %v984, %v983
    %v986 = vsub.s32 4, %v962
    %v987 = vsel %vm902, %v986, %v962
    %v988 = vsel %vm901, %v899, %v985
    %v989 = vsel %vm901, 0, %v987
    %v990 = vcosq.f32.pop %v988
    %v991 = vsinq.f32.pop %v988
    %vm992 = vweird.f32 %v899
    %v993 = vand.u32 %v989, 3
    %vm994 = vcmp.lt.s32.totalorder %v993, 2
    %vm995 = vcmp.eq.s32.totalorder %v993, 0
    %v996 = vxor.u32 %v991, 2147483648
    %v997 = vsel %vm995, %v990, %v996
    %vm998 = vcmp.eq.s32.totalorder %v993, 2
    %v999 = vxor.u32 %v990, 2147483648
    %v1000 = vsel %vm998, %v999, %v991
    %v1001 = vsel %vm994, %v997, %v1000
    %v1002 = vsel %vm992, nan, %v1001
    %v1003 = vlaneseq
    %v1004 = vshrl.u32 %v1003, 7
    %v1005 = vsub.s32 7, %v1004
    %v1006 = vrot.slane %v54, %v1005
    %v1007 = vmul.f32 %v1006, %v1002
    %v1008 = vadd.f32 %v889, %v1007
    %1009 = vst [vmem:[#allocation8] sm:$0xf] %v1008
    // Predicated region
    $region30: #{tpu_custom_call.1} parent=1 // pred_check
      _
    $region31: #{tpu_custom_call.1} parent=1 // pred_check_branch
      %1011 = sbr.rel (0) target = $region33
    $region32: #{tpu_custom_call.1} parent=1 // pred_region
      %s1013 = ssub.s32 64, 64
      %1014 = vsyncadd [#allocation4], %s1013
      %s1016 = sshll.u32 [#allocation8], 4
      %s1017 = int_to_ptr.vmem [resolvable:$true] %s1016
      %1019 = dma.vmem_to_hbm [thread:$0]  %s1017, 64, %s4, [#allocation4]
    $region33: #{tpu_custom_call.1} parent=1 // pred_fallthru
      _
    // Predicated region
    $region34: #{tpu_custom_call.1} parent=1 // pred_check
      _
    $region35: #{tpu_custom_call.1} parent=1 // pred_check_branch
      %1021 = sbr.rel (0) target = $region37
    $region36: #{tpu_custom_call.1} parent=1 // pred_region
      %1022 = dma.done [#allocation4], 64
    $region37: #{tpu_custom_call.1} parent=1 // pred_fallthru
      _
    %1023 = vsyncpa [#allocation3], 1
    %1024 = vsyncpa [#allocation6], 1
    %1025 = vsyncpa [#allocation4], 1

</llo_original>
